<compile_context>
chip_gen: v5e
topology: v5e:2x2
jax: 0.10.0
libtpu: 0.0.40
codegen_flags: <defaults>
</compile_context>

<pallas_src>
import functools
from math import floor

import jax
import jax.numpy as jnp
from jax.experimental import pallas as pl
from jax.experimental.pallas import tpu as pltpu

# -1 / (2 * 0.05**2) == -200.0 : fold the Gaussian's per-element divide into
# a single VPU multiply by a constant.
_GAUSS_COEF = -1.0 / (2.0 * 0.05 ** 2)

# Target ~1 MiB per block: with double-buffered input + output that is ~4 MiB
# of live VMEM, well under v5e's 16 MiB scoped default and v7x's 64 MiB,
# while large enough to sit near the HBM roofline for mem-bound elementwise.
_TARGET_BLOCK_BYTES = 1 << 20


def _pick_row_tile(nrows: int, row_bytes: int) -> int:
    """Largest row tile (multiple of 8, or the full dim) under the byte target."""
    if nrows * row_bytes <= _TARGET_BLOCK_BYTES:
        return nrows
    tb = max(8, (_TARGET_BLOCK_BYTES // row_bytes) // 8 * 8)
    return int(min(tb, nrows))


def _quarter_kernel(x_ref, y_ref):
    """Grid step (i, j): batch-tile i, feature-quarter j.

    Only the op needed by quarter j is evaluated, so sin / exp each touch 25%
    of the elements (instead of 100% + masking), keeping the single-slot EUP
    off the critical path.  No iota / where masking needed.
    """
    j = pl.program_id(1)
    x = x_ref[...]

    @pl.when(j == 0)
    def _():
        y_ref[...] = x

    @pl.when(j == 1)
    def _():
        y_ref[...] = x * x

    @pl.when(j == 2)
    def _():
        y_ref[...] = jnp.sin(x)

    @pl.when(j == 3)
    def _():
        y_ref[...] = jnp.exp((x * x) * _GAUSS_COEF)


def _masked_kernel(x_ref, y_ref, *, q_width, num_features, view_cols):
    """Fallback where-chain kernel (quarters not 128-lane aligned).

    The wrapper may have repacked the array into a lane-dense (rows, 128)
    view; in that case num_features is a power of two dividing 128 and the
    original feature index of each lane is simply `lane % num_features`.
    """
    x = x_ref[...]
    cols = jax.lax.broadcasted_iota(jnp.int32, x.shape, 1)
    if view_cols == num_features:
        f = cols
    else:
        # lane-dense view: num_features is a power of two dividing 128
        f = cols & (num_features - 1)

    gauss = jnp.exp((x * x) * _GAUSS_COEF)
    low = jnp.where(f < q_width, x, x * x)                 # quarters 0 / 1
    high = jnp.where(f < 3 * q_width, jnp.sin(x), gauss)   # quarters 2 / 3
    y_ref[...] = jnp.where(f < 2 * q_width, low, high).astype(y_ref.dtype)


def sin_relu2(x: jax.Array, num_features: int) -> jax.Array:
    """Pallas implementation of the sin_relu2 forward pass.

    x: (batch, num_features) float32
    """
    assert x.ndim == 2 and x.shape[1] == num_features
    B, F = x.shape
    q = floor(F / 4)
    itemsize = jnp.dtype(x.dtype).itemsize

    # --- Fast path: quarters are lane-aligned -> quarter index in the grid.
    if q > 0 and F == 4 * q and q % 128 == 0:
        tb = _pick_row_tile(B, q * itemsize)
        return pl.pallas_call(
            _quarter_kernel,
            out_shape=jax.ShapeDtypeStruct((B, F), x.dtype),
            grid=(pl.cdiv(B, tb), 4),
            in_specs=[pl.BlockSpec((tb, q), lambda i, j: (i, j))],
            out_specs=pl.BlockSpec((tb, q), lambda i, j: (i, j)),
            compiler_params=pltpu.CompilerParams(
                dimension_semantics=("parallel", "parallel"),
            ),
        )(x)

    # --- Fallback: masked where-chain.  If the feature dim is narrower than a
    # vreg lane row and tiles it evenly, repack to a lane-dense (rows, 128)
    # view so stores are full-width.
    orig_shape = x.shape
    if F < 128 and 128 % F == 0 and (B * F) % 128 == 0:
        xv = x.reshape((B * F) // 128, 128)
    else:
        xv = x
    R, C = xv.shape
    tb = _pick_row_tile(R, C * itemsize)

    kernel = functools.partial(
        _masked_kernel, q_width=q, num_features=F, view_cols=C)

    yv = pl.pallas_call(
        kernel,
        out_shape=jax.ShapeDtypeStruct((R, C), x.dtype),
        grid=(pl.cdiv(R, tb),),
        in_specs=[pl.BlockSpec((tb, C), lambda i: (i, 0))],
        out_specs=pl.BlockSpec((tb, C), lambda i: (i, 0)),
        compiler_params=pltpu.CompilerParams(
            dimension_semantics=("parallel",),
        ),
    )(xv)
    return yv.reshape(orig_shape)


def _reference(x: jnp.ndarray, num_features: int) -> jnp.ndarray:
    q = floor(num_features / 4)
    y = jnp.zeros_like(x)
    y = y.at[:, 0:q].set(x[:, 0:q])
    y = y.at[:, q:2 * q].set(x[:, q:2 * q] ** 2)
    y = y.at[:, 2 * q:3 * q].set(jnp.sin(x[:, 2 * q:3 * q]))
    y = y.at[:, 3 * q:num_features].set(
        jnp.exp(-x[:, 3 * q:num_features] ** 2 / (2 * 0.05 ** 2))
    )
    return y


if __name__ == "__main__":
    k1, k2 = jax.random.split(jax.random.PRNGKey(0))

    # Small narrow-feature shape (exercises the lane-dense masked fallback).
    batch, num_features = 8, 32
    x = jax.random.normal(k1, (batch, num_features), dtype=jnp.float32)
    y = jax.block_until_ready(sin_relu2(x, num_features))
    y_ref = _reference(x, num_features)
    assert jnp.allclose(y, y_ref, atol=1e-5, rtol=1e-5), "mismatch (masked path)"

    # Small lane-aligned shape (exercises the per-quarter grid fast path).
    batch2, num_features2 = 16, 512
    x2 = jax.random.normal(k2, (batch2, num_features2), dtype=jnp.float32)
    y2 = jax.block_until_ready(sin_relu2(x2, num_features2))
    y2_ref = _reference(x2, num_features2)
    assert jnp.allclose(y2, y2_ref, atol=1e-5, rtol=1e-5), "mismatch (aligned path)"

    print("KERNEL_OK")
</pallas_src>

<mosaic_0001>
module attributes {stable_mosaic.version = 11 : i64} {
  func.func @_masked_kernel(%arg0: i32, %arg1: memref<2x128xf32, #tpu.memory_space<vmem>>, %arg2: memref<2x128xf32, #tpu.memory_space<vmem>>) attributes {dimension_semantics = [#tpu.dimension_semantics<parallel>], iteration_bounds = array<i64: 1>, scalar_prefetch = 0 : i64, scratch_operands = 0 : i64, tpu.core_type = #tpu.core_type<tc>, window_params = [{transform_indices = @transform_0, window_bounds = array<i64: 2, 128>}, {transform_indices = @transform_1, window_bounds = array<i64: 2, 128>}]} {
    %c0 = arith.constant 0 : index
    %c0_0 = arith.constant 0 : index
    %0 = vector.load %arg1[%c0, %c0_0] : memref<2x128xf32, #tpu.memory_space<vmem>>, vector<2x128xf32>
    %1 = tpu.iota {dimensions = array<i32: 1>} : vector<2x128xi32>
    %c31_i32 = arith.constant 31 : i32
    %2 = vector.broadcast %c31_i32 : i32 to vector<2x128xi32>
    %3 = arith.andi %1, %2 : vector<2x128xi32>
    %4 = arith.mulf %0, %0 : vector<2x128xf32>
    %cst = arith.constant -2.000000e+02 : f32
    %5 = vector.broadcast %cst : f32 to vector<2x128xf32>
    %6 = arith.mulf %4, %5 : vector<2x128xf32>
    %7 = math.exp %6 : vector<2x128xf32>
    %c8_i32 = arith.constant 8 : i32
    %8 = vector.broadcast %c8_i32 : i32 to vector<2x128xi32>
    %9 = arith.cmpi slt, %3, %8 : vector<2x128xi32>
    %10 = arith.mulf %0, %0 : vector<2x128xf32>
    %11 = arith.select %9, %0, %10 : vector<2x128xi1>, vector<2x128xf32>
    %c24_i32 = arith.constant 24 : i32
    %12 = vector.broadcast %c24_i32 : i32 to vector<2x128xi32>
    %13 = arith.cmpi slt, %3, %12 : vector<2x128xi32>
    %14 = math.sin %0 : vector<2x128xf32>
    %15 = arith.select %13, %14, %7 : vector<2x128xi1>, vector<2x128xf32>
    %c16_i32 = arith.constant 16 : i32
    %16 = vector.broadcast %c16_i32 : i32 to vector<2x128xi32>
    %17 = arith.cmpi slt, %3, %16 : vector<2x128xi32>
    %18 = arith.select %17, %11, %15 : vector<2x128xi1>, vector<2x128xf32>
    %c0_1 = arith.constant 0 : index
    %c0_2 = arith.constant 0 : index
    %19 = vector.load %arg2[%c0_1, %c0_2] : memref<2x128xf32, #tpu.memory_space<vmem>>, vector<2x128xf32>
    tpu.vector_store %arg2[%c0_1, %c0_2], %18 {strides = array<i32>} : memref<2x128xf32, #tpu.memory_space<vmem>>, vector<2x128xf32>,
    return
  }
  func.func @transform_0(%arg0: i32) -> (i32, i32) {
    %c0_i32 = arith.constant 0 : i32
    %c0_i32_0 = arith.constant 0 : i32
    return %arg0, %c0_i32 : i32, i32
  }
  func.func @transform_1(%arg0: i32) -> (i32, i32) {
    %c0_i32 = arith.constant 0 : i32
    %c0_i32_0 = arith.constant 0 : i32
    return %arg0, %c0_i32 : i32, i32
  }
}

</mosaic_0001>

<llo_original>
// kernel: tpu_custom_call.1
$region0: #{tpu_custom_call.1}
  #allocation0 [shape = 'u32[]', space=smem, size = 0x4, offset = 0x4, fixed_abs, tag = 'smem constant byte address 0x4 - core index']
  #allocation1 [shape = 'u32[72,128]{1,0:T(1,128)}', space=vmem, size = 0x9000, scoped, tag = 'internal scratch']
  %s0 = inlined_call_operand.hbm [shape: f32[2,128], index: 0, kind: input, shape index: {}]
  %s1 = inlined_call_operand.hbm [shape: f32[2,128], index: 1, kind: output, shape index: {}]
  %s2 = sld [smem:[#allocation0]]
  $region18: #{tpu_custom_call.1} parent=0
    _
  %s4 = ssub.s32 1, %s2
  %s5 = scalar_select 0, %s4, %s2
  $region1: #{tpu_custom_call.1} parent=0
    #allocation2 [shape = 'u8[1024]{0}', space=vmem, size = 0x400, scoped, tag = 'input window, operand 0, single buffered']
    #allocation3 [shape = 's32[1]{0}', space=sflag, size = 0x4, scoped, tag = 'scoped memory for tpu_custom_call.1']
    #allocation4 [shape = 's32[1]{0}', space=sflag, size = 0x4, scoped, tag = 'scoped memory for tpu_custom_call.1']
    #allocation5 [shape = 'u8[1024]{0}', space=vmem, size = 0x400, scoped, tag = 'output window, operand 0, single buffered']
    %6 = vsyncpa [#allocation3], 0
    %7 = vsyncpa [#allocation4], 0
    // Predicated region
    $region2: #{tpu_custom_call.1} parent=1 // pred_check
      _
    $region3: #{tpu_custom_call.1} parent=1 // pred_check_branch
      %9 = sbr.rel (0) target = $region5
    $region4: #{tpu_custom_call.1} parent=1 // pred_region
      %11 = vsyncadd [#allocation3], 0
      %s13 = sshll.u32 %s0, 4
      %s14 = int_to_ptr.hbm [resolvable:$true] %s13
      %s15 = sshll.u32 [#allocation2], 4
      %s16 = int_to_ptr.vmem [resolvable:$true] %s15
      %18 = dma.hbm_to_vmem [thread:$0]  %s14, 32, %s16, [#allocation3]
    $region5: #{tpu_custom_call.1} parent=1 // pred_fallthru
      _
    // Predicated region
    $region6: #{tpu_custom_call.1} parent=1 // pred_check
      _
    $region7: #{tpu_custom_call.1} parent=1 // pred_check_branch
      %20 = sbr.rel (0) target = $region9
    $region8: #{tpu_custom_call.1} parent=1 // pred_region
      %22 = dma.done [#allocation3], 32
    $region9: #{tpu_custom_call.1} parent=1 // pred_fallthru
      _
    %v23 = vld [vmem:[#allocation2] sm:$0x3]
    %v24 = vlaneseq
    %v25 = vand.u32 %v24, 127
    %v26 = vand.u32 %v25, 31
    %v27 = vmul.f32 %v23, %v23
    %v28 = vmul.f32 %v27, -200.0
    %v29 = vmul.f32 %v28, 1.442695
    %v30 = vpow.pop %v29
    %vm31 = vcmp.lt.s32.totalorder %v26, 8
    %v32 = vsel %vm31, %v23, %v27
    %vm33 = vcmp.lt.s32.totalorder %v26, 24
    %v34 = vand.u32 2147483647, %v23
    %vm35 = vcmp.le.f32.partialorder %v34, 0.7853982
    %vm36 = vcmp.lt.s32.totalorder %v23, 0
    %v37 = vand.u32 %v23, 2139095040
    %v38 = vshrl.u32 %v37, 23
    %v39 = vsub.s32 %v38, 127
    %v40 = vand.u32 2147483647, %v23
    %v41 = vand.u32 %v40, 8388607
    %v42 = vor.u32 %v41, 8388608
    %v43 = vsub.s32 0, %v42
    %v44 = vadd.s32 %v39, 1
    %vm45 = vcmp.gt.s32.totalorder %v44, 0
    %v46 = vsel %vm45, %v44, 0
    %v47 = vshrl.u32 %v46, 5
    %v48 = vand.u32 %v46, 31
    %v49 = vsub.s32 32, %v48
    %v50 = vshrl.u32 683565275, %v49
    %v51 = vshll.u32 683565275, %v48
    %v52 = vshrl.u32 2475754826, %v49
    %v53 = vor.u32 %v51, %v52
    %v54 = vshll.u32 2475754826, %v48
    %v55 = vshrl.u32 2131351028, %v49
    %v56 = vor.u32 %v54, %v55
    %v57 = vshll.u32 2131351028, %v48
    %v58 = vshrl.u32 2102212464, %v49
    %v59 = vor.u32 %v57, %v58
    %v60 = vshll.u32 2102212464, %v48
    %v61 = vshrl.u32 920167782, %v49
    %v62 = vor.u32 %v60, %v61
    %v63 = vshll.u32 920167782, %v48
    %v64 = vshrl.u32 1326507024, %v49
    %v65 = vor.u32 %v63, %v64
    %vm66 = vcmp.lt.s32.totalorder %v47, 1
    %vm67 = vcmp.lt.s32.totalorder %v47, 2
    %vm68 = vcmp.lt.s32.totalorder %v47, 3
    %vm69 = vcmp.lt.s32.totalorder %v47, 4
    %v70 = vsel %vm66, %v50, %v53
    %v71 = vsel %vm69, %v59, 2102212464
    %v72 = vsel %vm68, %v56, %v71
    %v73 = vsel %vm67, %v70, %v72
    %v74 = vsel %vm66, %v53, %v56
    %v75 = vsel %vm69, %v62, 920167782
    %v76 = vsel %vm68, %v59, %v75
    %v77 = vsel %vm67, %v74, %v76
    %v78 = vsel %vm66, %v56, %v59
    %v79 = vsel %vm69, %v65, 1326507024
    %v80 = vsel %vm68, %v62, %v79
    %v81 = vsel %vm67, %v78, %v80
    %v82 = vshll.u32 %v42, 8
    %v83 = vand.u32 %v82, 65535
    %v84 = vshrl.u32 %v82, 16
    %v85 = vand.u32 %v81, 65535
    %v86 = vshrl.u32 %v81, 16
    %v87 = vmul.u32 %v83, %v85
    %v88 = vmul.u32 %v83, %v86
    %v89 = vmul.u32 %v84, %v85
    %v90 = vmul.u32 %v84, %v86
    %v91 = vshll.u32 %v88, 16
    %v92 = vshrl.u32 %v88, 16
    %v93 = vshll.u32 %v89, 16
    %v94 = vshrl.u32 %v89, 16
    %vm95 = vc.u32 %v87, %v91
    %v96 = vsel %vm95, 1, 0
    %v97 = vadd.s32 %v87, %v91
    %v98 = vadd.s32 %v90, %v96
    %vm99 = vc.u32 %v97, %v93
    %v100 = vsel %vm99, 1, 0
    %v101 = vadd.s32 %v97, %v93
    %v102 = vadd.s32 %v98, %v100
    %v103 = vadd.s32 %v102, %v92
    %v104 = vadd.s32 %v103, %v94
    %v105 = vand.u32 %v82, 65535
    %v106 = vshrl.u32 %v82, 16
    %v107 = vand.u32 %v77, 65535
    %v108 = vshrl.u32 %v77, 16
    %v109 = vmul.u32 %v105, %v107
    %v110 = vmul.u32 %v105, %v108
    %v111 = vmul.u32 %v106, %v107
    %v112 = vmul.u32 %v106, %v108
    %v113 = vshll.u32 %v110, 16
    %v114 = vshrl.u32 %v110, 16
    %v115 = vshll.u32 %v111, 16
    %v116 = vshrl.u32 %v111, 16
    %vm117 = vc.u32 %v109, %v113
    %v118 = vsel %vm117, 1, 0
    %v119 = vadd.s32 %v109, %v113
    %v120 = vadd.s32 %v112, %v118
    %vm121 = vc.u32 %v119, %v115
    %v122 = vsel %vm121, 1, 0
    %v123 = vadd.s32 %v119, %v115
    %v124 = vadd.s32 %v120, %v122
    %v125 = vadd.s32 %v124, %v114
    %v126 = vadd.s32 %v125, %v116
    %v127 = vmul.u32 %v82, %v73
    %v128 = vadd.s32 %v104, %v123
    %vm129 = vc.u32 %v104, %v123
    %v130 = vadd.s32 %v126, 1
    %v131 = vsel %vm129, %v130, %v126
    %v132 = vadd.s32 %v127, %v131
    %v133 = vadd.s32 %v132, 536870912
    %v134 = vshrl.u32 %v133, 30
    %v135 = vshll.u32 %v134, 30
    %v136 = vsub.s32 %v132, %v135
    %vm137 = vcmp.lt.s32.totalorder %v136, 0
    %v138 = vsub.s32 0, %v136
    %v139 = vsel %vm137, %v138, %v136
    %v140 = vclz %v139
    %v141 = vsub.s32 %v140, 2
    %vm142 = vcmp.gt.s32.totalorder 0, %v141
    %v143 = vsel %vm142, 0, %v141
    %v144 = vsub.s32 32, %v143
    %v145 = vshll.u32 %v136, %v143
    %v146 = vshrl.u32 %v128, %v144
    %v147 = vor.u32 %v145, %v146
    %v148 = vsub.s32 4294967266, %v143
    %v149 = vadd.s32 %v148, 127
    %v150 = vshll.u32 %v149, 23
    %v151 = vor.u32 4788187, %v150
    %v152 = vand.u32 2147483647, %v151
    %v154 = vcvt.s32.f32 %v147
    %v155 = vmul.f32 %v154, %v152
    %v156 = vxor.u32 %v155, 2147483648
    %v157 = vsel %vm36, %v156, %v155
    %v158 = vsub.s32 4, %v134
    %v159 = vsel %vm36, %v158, %v134
    %v160 = vsel %vm35, %v23, %v157
    %v161 = vsel %vm35, 0, %v159
    %v162 = vmul.f32 %v160, %v160
    %v163 = vmul.f32 %v162, -0.001358992
    %v164 = vadd.f32 %v163, 0.041655596
    %v165 = vmul.f32 %v162, %v164
    %v166 = vadd.f32 %v165, -0.4999988
    %v167 = vmul.f32 %v162, %v166
    %v168 = vadd.f32 1.0, %v167
    %v169 = vmul.f32 %v160, %v160
    %v170 = vmul.f32 %v169, -0.00019511016
    %v171 = vadd.f32 %v170, 0.008332121
    %v172 = vmul.f32 %v169, %v171
    %v173 = vadd.f32 %v172, -0.16666654
    %v174 = vmul.f32 %v169, %v173
    %v175 = vadd.f32 %v174, 1.0
    %v176 = vmul.f32 %v175, %v160
    %vm177 = vweird.f32 %v23
    %v178 = vadd.s32 %v161, 3
    %v179 = vand.u32 %v178, 3
    %vm180 = vcmp.lt.s32.totalorder %v179, 2
    %vm181 = vcmp.eq.s32.totalorder %v179, 0
    %v182 = vxor.u32 %v176, 2147483648
    %v183 = vsel %vm181, %v168, %v182
    %vm184 = vcmp.eq.s32.totalorder %v179, 2
    %v185 = vxor.u32 %v168, 2147483648
    %v186 = vsel %vm184, %v185, %v176
    %v187 = vsel %vm180, %v183, %v186
    %v188 = vsel %vm177, nan, %v187
    %v189 = vsel %vm33, %v188, %v30
    %vm190 = vcmp.lt.s32.totalorder %v26, 16
    %v191 = vsel %vm190, %v32, %v189
    %192 = vst [vmem:[#allocation5] sm:$0x3] %v191
    // Predicated region
    $region10: #{tpu_custom_call.1} parent=1 // pred_check
      _
    $region11: #{tpu_custom_call.1} parent=1 // pred_check_branch
      %194 = sbr.rel (0) target = $region13
    $region12: #{tpu_custom_call.1} parent=1 // pred_region
      %196 = vsyncadd [#allocation4], 0
      %s198 = sshll.u32 [#allocation5], 4
      %s199 = int_to_ptr.vmem [resolvable:$true] %s198
      %s200 = sshll.u32 %s1, 4
      %s201 = int_to_ptr.hbm [resolvable:$true] %s200
      %203 = dma.vmem_to_hbm [thread:$0]  %s199, 32, %s201, [#allocation4]
    $region13: #{tpu_custom_call.1} parent=1 // pred_fallthru
      _
    // Predicated region
    $region14: #{tpu_custom_call.1} parent=1 // pred_check
      _
    $region15: #{tpu_custom_call.1} parent=1 // pred_check_branch
      %205 = sbr.rel (0) target = $region17
    $region16: #{tpu_custom_call.1} parent=1 // pred_region
      %207 = dma.done [#allocation4], 32
    $region17: #{tpu_custom_call.1} parent=1 // pred_fallthru
      _
    %208 = vsyncpa [#allocation3], 1
    %209 = vsyncpa [#allocation4], 1

</llo_original>
